<compile_context>
chip_gen: v6e
topology: v6e:2x2x1
jax: 0.10.0
libtpu: 0.0.40
codegen_flags: <defaults>
</compile_context>

<pallas_src>
import math

import jax
import jax.numpy as jnp
from jax.experimental import pallas as pl
from jax.experimental.pallas import tpu as pltpu


def _pair(v):
    return (v, v) if isinstance(v, int) else tuple(v)


def _round_up(v, m):
    return ((v + m - 1) // m) * m


# --------------------------------------------------------------------------
# Bilinear im2col (XLA): channel-minor, P-major, bf16, pre-padded spatial axis
# --------------------------------------------------------------------------
def deform_im2col(x, offset, kernel_size, stride, padding, dilation, dg, p_pad,
                  col_dtype=jnp.bfloat16):
    """Channel-minor bilinear im2col (mmcv deform_conv v1 semantics).

    Returns cols of shape (N, dg, p_pad, kH*kW*C_per_dg) in `col_dtype`, with
    the last axis ordered (kh, kw, c_within_deformable_group) and the spatial
    axis zero-padded from H_out*W_out to p_pad.
    """
    N, C, H, W = x.shape
    kH, kW = kernel_size
    sh, sw = stride
    ph, pw = padding
    dh, dw = dilation
    H_out = (H + 2 * ph - (dh * (kH - 1) + 1)) // sh + 1
    W_out = (W + 2 * pw - (dw * (kW - 1) + 1)) // sw + 1
    P = H_out * W_out
    KK = kH * kW
    Cdg = C // dg
    f = jnp.float32

    # offsets -> (N, dg, H_out, W_out, kH, kW, 2); mmcv layout: per deformable
    # group, channel 2*(kh*kW+kw) is the y offset, +1 is the x offset.
    off = offset.reshape(N, dg, kH, kW, 2, H_out, W_out)
    off = off.transpose(0, 1, 5, 6, 2, 3, 4).astype(f)

    base_h = ((jnp.arange(H_out) * sh - ph).astype(f)[:, None, None, None]
              + (jnp.arange(kH) * dh).astype(f)[None, None, :, None])
    base_w = ((jnp.arange(W_out) * sw - pw).astype(f)[None, :, None, None]
              + (jnp.arange(kW) * dw).astype(f)[None, None, None, :])
    h_im = base_h + off[..., 0]            # (N, dg, H_out, W_out, kH, kW)
    w_im = base_w + off[..., 1]

    in_b = (h_im > -1) & (w_im > -1) & (h_im < H) & (w_im < W)
    h_low = jnp.floor(h_im)
    w_low = jnp.floor(w_im)
    lh = h_im - h_low
    lw = w_im - w_low
    hh = 1.0 - lh
    hw = 1.0 - lw
    h0 = h_low.astype(jnp.int32)
    w0 = w_low.astype(jnp.int32)
    h1 = h0 + 1
    w1 = w0 + 1

    # Fold the 4 corner-validity masks and the in-bounds test into the
    # channel-free bilinear weights -> per-channel path is 4 multiply-adds.
    m1 = ((h0 >= 0) & (w0 >= 0) & in_b).astype(f)
    m2 = ((h0 >= 0) & (w1 <= W - 1) & in_b).astype(f)
    m3 = ((h1 <= H - 1) & (w0 >= 0) & in_b).astype(f)
    m4 = ((h1 <= H - 1) & (w1 <= W - 1) & in_b).astype(f)
    wt1 = hh * hw * m1
    wt2 = hh * lw * m2
    wt3 = lh * hw * m3
    wt4 = lh * lw * m4

    h0c = jnp.clip(h0, 0, H - 1)
    w0c = jnp.clip(w0, 0, W - 1)
    h1c = jnp.clip(h1, 0, H - 1)
    w1c = jnp.clip(w1, 0, W - 1)

    def flat_pad(a):
        # (N, dg, H_out, W_out, kH, kW) -> (N, dg, p_pad*KK); only the small
        # channel-free tensors get padded, so cols come out pre-padded.
        a = a.reshape(N, dg, P, KK)
        if p_pad != P:
            a = jnp.pad(a, ((0, 0), (0, 0), (0, p_pad - P), (0, 0)))
        return a.reshape(N, dg, p_pad * KK)

    i1 = flat_pad(h0c * W + w0c)
    i2 = flat_pad(h0c * W + w1c)
    i3 = flat_pad(h1c * W + w0c)
    i4 = flat_pad(h1c * W + w1c)
    wt1 = flat_pad(wt1)[..., None]
    wt2 = flat_pad(wt2)[..., None]
    wt3 = flat_pad(wt3)[..., None]
    wt4 = flat_pad(wt4)[..., None]

    # Channel-minor x: each gathered position pulls a contiguous C/dg-wide row
    # in bf16 with a small (no channel broadcast) index tensor.
    xr = x.astype(col_dtype).reshape(N, dg, Cdg, H * W).transpose(0, 1, 3, 2)

    def gather(idx):
        return jnp.take_along_axis(xr, idx[..., None], axis=2,
                                   mode="promise_in_bounds")

    val = (wt1 * gather(i1) + wt2 * gather(i2)
           + wt3 * gather(i3) + wt4 * gather(i4))      # f32 (N, dg, Lp, Cdg)
    return val.astype(col_dtype).reshape(N, dg, p_pad, KK * Cdg)


# --------------------------------------------------------------------------
# Pallas grouped-GEMM kernels
# --------------------------------------------------------------------------
def _gemm_kernel_nored(w_ref, c_ref, o_ref):
    # w_ref: (1, Kd, C_out_g) bf16 ; c_ref: (1, 1, tp, Kd) bf16
    # o_ref: (1, 1, tp, C_out_g)
    o_ref[0, 0] = jnp.dot(c_ref[0, 0], w_ref[0],
                          preferred_element_type=jnp.float32).astype(o_ref.dtype)


def _gemm_kernel_acc(w_ref, c_ref, o_ref, acc_ref):
    # w_ref: (dpg, Kd, C_out_g) bf16  -- whole per-group weight, VMEM-resident
    # c_ref: (1, 1, tp, Kd) bf16 ; o_ref: (1, 1, tp, C_out_g)
    # acc_ref: (tp, C_out_g) f32 scratch
    k = pl.program_id(3)

    @pl.when(k == 0)
    def _():
        acc_ref[...] = jnp.zeros_like(acc_ref)

    acc_ref[...] += jnp.dot(c_ref[0, 0], w_ref[k],
                            preferred_element_type=jnp.float32)

    @pl.when(k == pl.num_programs(3) - 1)
    def _():
        o_ref[0, 0] = acc_ref[...].astype(o_ref.dtype)


# --------------------------------------------------------------------------
# Forward
# --------------------------------------------------------------------------
def deform_conv_forward(x, offset, weight, stride=1, padding=0, dilation=1,
                        groups=1, deformable_groups=1):
    stride, padding, dilation = _pair(stride), _pair(padding), _pair(dilation)
    N, C_in, H, W = x.shape
    C_out, C_in_g, kH, kW = weight.shape
    dg = deformable_groups
    assert C_in_g * groups == C_in
    assert C_out % groups == 0
    assert C_in % dg == 0
    C_out_g = C_out // groups
    C_per_dg = C_in // dg

    sh, sw = stride
    ph, pw = padding
    dh, dw = dilation
    H_out = (H + 2 * ph - (dh * (kH - 1) + 1)) // sh + 1
    W_out = (W + 2 * pw - (dw * (kW - 1) + 1)) // sw + 1
    P = H_out * W_out
    Pp = _round_up(P, 128)
    KK = kH * kW
    Kd = KK * C_per_dg

    cols = deform_im2col(x, offset, (kH, kW), stride, padding, dilation, dg,
                         Pp, col_dtype=jnp.bfloat16)     # (N, dg, Pp, Kd)

    if dg % groups != 0:
        # TODO(synk): rare layout (groups not dividing deformable_groups);
        # plain-XLA fallback keeps the module fully general.
        colsK = (cols.reshape(N, dg, Pp, KK, C_per_dg)
                     .transpose(0, 1, 4, 3, 2)
                     .reshape(N, groups, C_in_g * KK, Pp)[:, :, :, :P]
                     .astype(jnp.float32))
        wr = weight.reshape(groups, C_out_g, C_in_g * KK).astype(jnp.float32)
        out = jnp.einsum("gok,ngkp->ngop", wr, colsK)
        return out.reshape(N, C_out, H_out, W_out).astype(x.dtype)

    dpg = dg // groups
    # weight -> (dg, Kd, C_out_g) with Kd ordered (kh, kw, c) to match cols.
    w_perm = (weight.astype(jnp.bfloat16)
                    .reshape(groups, C_out_g, dpg, C_per_dg, kH, kW)
                    .transpose(0, 2, 4, 5, 3, 1)
                    .reshape(dg, Kd, C_out_g))

    out_itemsize = jnp.dtype(x.dtype).itemsize

    def vmem_bytes(tp):
        cols_blk = tp * Kd * 2
        out_blk = tp * C_out_g * out_itemsize
        w_blk = dpg * Kd * C_out_g * 2
        acc = tp * C_out_g * 4
        return 2 * (cols_blk + out_blk + w_blk) + acc   # inputs/outputs double-buffered

    TP_MAX = 2048
    VMEM_BUDGET = 40 * 1024 * 1024      # fits v7x's 64 MiB VMEM with headroom
    nb = Pp // 128
    divisors = [m * 128 for m in range(1, nb + 1) if nb % m == 0]
    fitting = [t for t in divisors if t <= TP_MAX and vmem_bytes(t) <= VMEM_BUDGET]
    if not fitting:
        fitting = [128]
    tp = max(fitting)
    # keep >= 2 "parallel" grid steps when possible (v7x has 2 TensorCores)
    if groups * N * (Pp // tp) < 2:
        smaller = [t for t in fitting if Pp // t >= 2]
        if smaller:
            tp = max(smaller)
    num_p = Pp // tp
    vlim = int(min(max(vmem_bytes(tp) + (8 << 20), 32 << 20), 96 << 20))

    cost = pl.CostEstimate(
        flops=2 * N * dg * Pp * Kd * C_out_g,
        transcendentals=0,
        bytes_accessed=(cols.size * 2 + w_perm.size * 2
                        + N * groups * Pp * C_out_g * out_itemsize))

    out_shape = jax.ShapeDtypeStruct((N, groups, Pp, C_out_g), x.dtype)

    if dpg == 1:
        out = pl.pallas_call(
            _gemm_kernel_nored,
            out_shape=out_shape,
            grid_spec=pltpu.PrefetchScalarGridSpec(
                num_scalar_prefetch=0,
                grid=(groups, N, num_p),
                in_specs=[
                    pl.BlockSpec((1, Kd, C_out_g), lambda g, n, p: (g, 0, 0)),
                    pl.BlockSpec((1, 1, tp, Kd), lambda g, n, p: (n, g, p, 0)),
                ],
                out_specs=pl.BlockSpec((1, 1, tp, C_out_g),
                                       lambda g, n, p: (n, g, p, 0)),
            ),
            compiler_params=pltpu.CompilerParams(
                dimension_semantics=("parallel", "parallel", "parallel"),
                vmem_limit_bytes=vlim),
            cost_estimate=cost,
        )(w_perm, cols)
    else:
        out = pl.pallas_call(
            _gemm_kernel_acc,
            out_shape=out_shape,
            grid_spec=pltpu.PrefetchScalarGridSpec(
                num_scalar_prefetch=0,
                grid=(groups, N, num_p, dpg),
                in_specs=[
                    # whole per-group weight resident across (n, p, k)
                    pl.BlockSpec((dpg, Kd, C_out_g),
                                 lambda g, n, p, k: (g, 0, 0)),
                    pl.BlockSpec((1, 1, tp, Kd),
                                 lambda g, n, p, k: (n, g * dpg + k, p, 0)),
                ],
                out_specs=pl.BlockSpec((1, 1, tp, C_out_g),
                                       lambda g, n, p, k: (n, g, p, 0)),
                scratch_shapes=[pltpu.VMEM((tp, C_out_g), jnp.float32)],
            ),
            compiler_params=pltpu.CompilerParams(
                dimension_semantics=("parallel", "parallel", "parallel",
                                     "arbitrary"),
                vmem_limit_bytes=vlim),
            cost_estimate=cost,
        )(w_perm, cols)

    out = out[:, :, :P, :].transpose(0, 1, 3, 2)        # (N, G, C_out_g, P)
    return out.reshape(N, C_out, H_out, W_out)


class DeformConv:
    """JAX equivalent of the PyTorch DeformConv module (bias=False), fwd only."""

    def __init__(self, in_channels, out_channels, kernel_size, stride=1,
                 padding=0, dilation=1, groups=1, deformable_groups=1, *, key):
        assert in_channels % groups == 0 and out_channels % groups == 0
        self.in_channels = in_channels
        self.out_channels = out_channels
        self.kernel_size = _pair(kernel_size)
        self.stride = _pair(stride)
        self.padding = _pair(padding)
        self.dilation = _pair(dilation)
        self.groups = groups
        self.deformable_groups = deformable_groups
        # reset_parameters(): uniform(-stdv, stdv), stdv = 1/sqrt(C_in*kH*kW)
        n = in_channels
        for k in self.kernel_size:
            n *= k
        stdv = 1.0 / math.sqrt(n)
        self.weight = jax.random.uniform(
            key, (out_channels, in_channels // groups, *self.kernel_size),
            jnp.float32, minval=-stdv, maxval=stdv)

    def __call__(self, x, offset):
        return deform_conv_forward(
            x, offset, self.weight, self.stride, self.padding, self.dilation,
            self.groups, self.deformable_groups)


# --------------------------------------------------------------------------
# Pure-JAX f32 reference (independent channel-major layout)
# --------------------------------------------------------------------------
def _reference_deform_conv(x, offset, weight, stride, padding, dilation,
                           groups, dg):
    N, C, H, W = x.shape
    C_out, C_in_g, kH, kW = weight.shape
    sh, sw = stride
    ph, pw = padding
    dh, dw = dilation
    H_out = (H + 2 * ph - (dh * (kH - 1) + 1)) // sh + 1
    W_out = (W + 2 * pw - (dw * (kW - 1) + 1)) // sw + 1
    Cdg = C // dg
    f = jnp.float32

    base_h = (jnp.arange(H_out) * sh - ph)[None, :] + (jnp.arange(kH) * dh)[:, None]
    base_w = (jnp.arange(W_out) * sw - pw)[None, :] + (jnp.arange(kW) * dw)[:, None]
    base_h = base_h[:, None, :, None].astype(f)        # (kH, 1, H_out, 1)
    base_w = base_w[None, :, None, :].astype(f)        # (1, kW, 1, W_out)

    off = offset.reshape(N, dg, kH, kW, 2, H_out, W_out).astype(f)
    h_im = base_h[None, None] + off[:, :, :, :, 0]
    w_im = base_w[None, None] + off[:, :, :, :, 1]
    inb = (h_im > -1) & (w_im > -1) & (h_im < H) & (w_im < W)
    h0 = jnp.floor(h_im)
    w0 = jnp.floor(w_im)
    lh = h_im - h0
    lw = w_im - w0
    hh = 1 - lh
    hw = 1 - lw
    h0i = h0.astype(jnp.int32)
    w0i = w0.astype(jnp.int32)
    h1i = h0i + 1
    w1i = w0i + 1
    m1 = ((h0i >= 0) & (w0i >= 0) & inb).astype(f)
    m2 = ((h0i >= 0) & (w1i <= W - 1) & inb).astype(f)
    m3 = ((h1i <= H - 1) & (w0i >= 0) & inb).astype(f)
    m4 = ((h1i <= H - 1) & (w1i <= W - 1) & inb).astype(f)

    xr = x.astype(f).reshape(N, dg, Cdg, H * W)
    L = kH * kW * H_out * W_out

    def g(hi, wi):
        fl = (jnp.clip(hi, 0, H - 1) * W + jnp.clip(wi, 0, W - 1)).reshape(N, dg, 1, L)
        fl = jnp.broadcast_to(fl, (N, dg, Cdg, L))
        return jnp.take_along_axis(xr, fl, axis=3).reshape(
            N, dg, Cdg, kH, kW, H_out, W_out)

    val = ((hh * hw * m1)[:, :, None] * g(h0i, w0i)
           + (hh * lw * m2)[:, :, None] * g(h0i, w1i)
           + (lh * hw * m3)[:, :, None] * g(h1i, w0i)
           + (lh * lw * m4)[:, :, None] * g(h1i, w1i))
    cols = val.reshape(N, groups, C_in_g * kH * kW, H_out * W_out)
    wr = weight.reshape(groups, C_out // groups, C_in_g * kH * kW).astype(f)
    out = jnp.einsum("gok,ngkp->ngop", wr, cols)
    return out.reshape(N, C_out, H_out, W_out)


if __name__ == "__main__":
    key = jax.random.PRNGKey(0)
    case_keys = jax.random.split(key, 3)

    def run_case(case_key, *, N, C_in, H, W, C_out, kH, kW, stride, padding,
                 dilation, groups, dg):
        kx, ko, kw_ = jax.random.split(case_key, 3)
        H_out = (H + 2 * padding - (dilation * (kH - 1) + 1)) // stride + 1
        W_out = (W + 2 * padding - (dilation * (kW - 1) + 1)) // stride + 1

        x = jax.random.normal(kx, (N, C_in, H, W), jnp.float32)
        offset = 0.5 * jax.random.normal(
            ko, (N, dg * 2 * kH * kW, H_out, W_out), jnp.float32)

        conv = DeformConv(C_in, C_out, (kH, kW), stride=stride, padding=padding,
                          dilation=dilation, groups=groups,
                          deformable_groups=dg, key=kw_)

        out = jax.block_until_ready(jax.jit(conv)(x, offset))
        assert out.shape == (N, C_out, H_out, W_out), out.shape

        ref = _reference_deform_conv(x, offset, conv.weight, _pair(stride),
                                     _pair(padding), _pair(dilation), groups, dg)
        err = float(jnp.max(jnp.abs(out - ref)))
        # kernel path uses bf16 columns/weights; reference is pure f32.
        assert jnp.allclose(out, ref, atol=6e-2, rtol=6e-2), f"max abs err {err}"

    # 1) plain case: groups=1, dg=1 -> single-step kernel (no accumulator)
    run_case(case_keys[0], N=2, C_in=4, H=16, W=16, C_out=8, kH=3, kW=3,
             stride=1, padding=1, dilation=1, groups=1, dg=1)
    # 2) AANet-like: groups=1, dg=2 -> exercises the dpg-reduction accumulator
    run_case(case_keys[1], N=2, C_in=8, H=16, W=16, C_out=8, kH=3, kW=3,
             stride=1, padding=1, dilation=1, groups=2 // 2, dg=2)
    # 3) grouped + strided + non-128-multiple P -> exercises padding path
    run_case(case_keys[2], N=1, C_in=8, H=15, W=15, C_out=8, kH=3, kW=3,
             stride=2, padding=1, dilation=1, groups=2, dg=2)

    print("KERNEL_OK")
</pallas_src>

<mosaic_0001>
module attributes {stable_mosaic.version = 11 : i64} {
  func.func @_gemm_kernel_nored(%arg0: i32, %arg1: i32, %arg2: i32, %arg3: memref<1x36x8xbf16, #tpu.memory_space<vmem>>, %arg4: memref<1x1x256x36xbf16, #tpu.memory_space<vmem>>, %arg5: memref<1x1x256x8xf32, #tpu.memory_space<vmem>>) attributes {dimension_semantics = [#tpu.dimension_semantics<parallel>, #tpu.dimension_semantics<parallel>, #tpu.dimension_semantics<parallel>], iteration_bounds = array<i64: 1, 2, 1>, scalar_prefetch = 0 : i64, scratch_operands = 0 : i64, tpu.core_type = #tpu.core_type<tc>, window_params = [{transform_indices = @transform_0, window_bounds = array<i64: 1, 36, 8>}, {transform_indices = @transform_1, window_bounds = array<i64: 1, 1, 256, 36>}, {transform_indices = @transform_2, window_bounds = array<i64: 1, 1, 256, 8>}]} {
    %c0 = arith.constant 0 : index
    %c0_0 = arith.constant 0 : index
    %c0_1 = arith.constant 0 : index
    %c0_2 = arith.constant 0 : index
    %0 = vector.load %arg4[%c0, %c0_0, %c0_1, %c0_2] : memref<1x1x256x36xbf16, #tpu.memory_space<vmem>>, vector<1x1x256x36xbf16>
    %1 = vector.shape_cast %0 : vector<1x1x256x36xbf16> to vector<256x36xbf16>
    %c0_3 = arith.constant 0 : index
    %c0_4 = arith.constant 0 : index
    %c0_5 = arith.constant 0 : index
    %2 = vector.load %arg3[%c0_3, %c0_4, %c0_5] : memref<1x36x8xbf16, #tpu.memory_space<vmem>>, vector<1x36x8xbf16>
    %3 = vector.shape_cast %2 : vector<1x36x8xbf16> to vector<36x8xbf16>
    %cst = arith.constant dense<0.000000e+00> : vector<256x8xf32>
    %4 = tpu.matmul %1, %3, %cst {dimension_numbers = #tpu.dot_dimension_numbers<[1], [0], [0], [1], [0, 0, 1, 1], [], []>} : vector<256x36xbf16>, vector<36x8xbf16>, vector<256x8xf32> -> vector<256x8xf32>
    %c0_6 = arith.constant 0 : index
    %c0_7 = arith.constant 0 : index
    %c0_8 = arith.constant 0 : index
    %c0_9 = arith.constant 0 : index
    %5 = vector.load %arg5[%c0_6, %c0_7, %c0_8, %c0_9] : memref<1x1x256x8xf32, #tpu.memory_space<vmem>>, vector<1x1x256x8xf32>
    %6 = vector.shape_cast %5 : vector<1x1x256x8xf32> to vector<256x8xf32>
    %7 = vector.shape_cast %4 : vector<256x8xf32> to vector<1x1x256x8xf32>
    tpu.vector_store %arg5[%c0_6, %c0_7, %c0_8, %c0_9], %7 {strides = array<i32>} : memref<1x1x256x8xf32, #tpu.memory_space<vmem>>, vector<1x1x256x8xf32>,
    return
  }
  func.func @transform_0(%arg0: i32, %arg1: i32, %arg2: i32) -> (i32, i32, i32) {
    %c0_i32 = arith.constant 0 : i32
    %c0_i32_0 = arith.constant 0 : i32
    %c0_i32_1 = arith.constant 0 : i32
    return %arg0, %c0_i32, %c0_i32_0 : i32, i32, i32
  }
  func.func @transform_1(%arg0: i32, %arg1: i32, %arg2: i32) -> (i32, i32, i32, i32) {
    %c0_i32 = arith.constant 0 : i32
    %c0_i32_0 = arith.constant 0 : i32
    return %arg1, %arg0, %arg2, %c0_i32 : i32, i32, i32, i32
  }
  func.func @transform_2(%arg0: i32, %arg1: i32, %arg2: i32) -> (i32, i32, i32, i32) {
    %c0_i32 = arith.constant 0 : i32
    %c0_i32_0 = arith.constant 0 : i32
    return %arg1, %arg0, %arg2, %c0_i32 : i32, i32, i32, i32
  }
}

</mosaic_0001>

<llo_original>
// kernel: _unnamed_function_.1
$region0: #{_unnamed_function_.1}
  #allocation0 [shape = 'u32[]', space=smem, size = 0x4, offset = 0x4, fixed_abs, tag = 'smem constant byte address 0x4 - core index']
  #allocation1 [shape = 'u32[144,128]{1,0:T(1,128)}', space=vmem, size = 0x12000, scoped, tag = 'internal scratch']
  %s0 = inlined_call_operand.vmem [shape: bf16[1,36,8], index: 0, kind: input, shape index: {}]
  %s1 = inlined_call_operand.vmem [shape: bf16[2,1,256,36], index: 1, kind: input, shape index: {}]
  %s2 = inlined_call_operand.vmem [shape: f32[2,1,256,8], index: 2, kind: output, shape index: {}]
  %s3 = sld [smem:[#allocation0]]
  $region41: #{_unnamed_function_.1} parent=0
    _
  %s5 = ssub.s32 1, %s3
  %s6 = scalar_select 0, %s5, %s3
  loop: start=0, step=1, limit=4
  $region2: #{_unnamed_function_.1} parent=0 // loop_pre_header
    _
  $region3: #{_unnamed_function_.1} parent=0 // loop_header
    %s8 = sphi 0, %s12
    %p9 = scmp.ge.s32.totalorder %s8, 4
    %s15 = sphi 0, %s34
    %s16 = sphi 0, %s30
    %s17 = sphi 0, %s26
    %s18 = sphi 0, %s15
    %s19 = sphi 0, %s16
    %s20 = sphi 0, %s17
    %s21 = sphi 0, %s18
    %s22 = sphi 0, %s19
    %s23 = sphi 0, %s20
    %s37 = sphi 0, %s39
    %s40 = sphi 0, %s37
    %s41 = sphi 0, %s40
    %s57 = sphi 0, %s41
    %s67 = sphi 0, %s69
    %s70 = sphi 0, %s67
    %s71 = sphi 0, %s70
    %s87 = sphi 0, %s71
    %s97 = sphi 0, %s99
    %s100 = sphi 0, %s97
    %s101 = sphi 0, %s100
    %s117 = sphi 0, %s101
  $region4: #{_unnamed_function_.1} parent=0 // loop_header_branch
    %11 = sbr.rel (%p9) target = $region8
  $region5: #{_unnamed_function_.1} parent=0 // loop_body
    %s13 = ssub.s32 %s8, 1
    %s14 = ssub.s32 %s8, 2
    %s24 = sadd.s32 1, %s17
    %p25 = scmp.ge.s32.totalorder %s24, 1
    %s26 = scalar_select %p25, 0, %s24
    %s27 = sadd.s32 1, %s16
    %s28 = scalar_select %p25, %s27, %s16
    %p29 = scmp.ge.s32.totalorder %s28, 2
    %s30 = scalar_select %p29, 0, %s28
    %s31 = sadd.s32 1, %s15
    %s32 = scalar_select %p29, %s31, %s15
    %p33 = scmp.ge.s32.totalorder %s32, 1
    %s34 = scalar_select %p33, 0, %s32
    %s35 = ssub.s32 %s15, %s34
    %p36 = scmp.eq.s32.totalorder %s35, 0
    %s38 = sadd.s32 %s37, 1
    %s39 = scalar_select %p36, %s37, %s38
    %p42 = pneg %p36
    %p43 = scmp.eq.s32.totalorder %s8, 1
    %p44 = por %p42, %p43
    %p45 = scmp.ne.s32.totalorder %s37, %s40
    %p46 = scmp.eq.s32.totalorder %s8, 0
    %p47 = por %p45, %p46
    %p48 = scmp.ne.s32.totalorder %s37, %s40
    %p49 = scmp.eq.s32.totalorder %s13, 1
    %p50 = por %p48, %p49
    %p51 = scmp.ne.s32.totalorder %s40, %s41
    %p52 = scmp.eq.s32.totalorder %s13, 0
    %p53 = por %p51, %p52
    %p54 = scmp.ne.s32.totalorder %s40, %s41
    %p55 = scmp.eq.s32.totalorder %s14, 1
    %p56 = por %p54, %p55
    %p58 = scmp.ne.s32.totalorder %s41, %s57
    %p59 = scmp.eq.s32.totalorder %s14, 0
    %p60 = por %p58, %p59
    %s61 = ssub.s32 %s16, %s30
    %s62 = ssub.s32 %s15, %s34
    %s63 = sor.u32 %s61, %s62
    %s64 = ssub.s32 %s17, %s26
    %s65 = sor.u32 %s63, %s64
    %p66 = scmp.eq.s32.totalorder %s65, 0
    %s68 = sadd.s32 %s67, 1
    %s69 = scalar_select %p66, %s67, %s68
    %p72 = pneg %p66
    %p73 = scmp.eq.s32.totalorder %s8, 1
    %p74 = por %p72, %p73
    %p75 = scmp.ne.s32.totalorder %s67, %s70
    %p76 = scmp.eq.s32.totalorder %s8, 0
    %p77 = por %p75, %p76
    %p78 = scmp.ne.s32.totalorder %s67, %s70
    %p79 = scmp.eq.s32.totalorder %s13, 1
    %p80 = por %p78, %p79
    %p81 = scmp.ne.s32.totalorder %s70, %s71
    %p82 = scmp.eq.s32.totalorder %s13, 0
    %p83 = por %p81, %p82
    %p84 = scmp.ne.s32.totalorder %s70, %s71
    %p85 = scmp.eq.s32.totalorder %s14, 1
    %p86 = por %p84, %p85
    %p88 = scmp.ne.s32.totalorder %s71, %s87
    %p89 = scmp.eq.s32.totalorder %s14, 0
    %p90 = por %p88, %p89
    %s91 = ssub.s32 %s16, %s30
    %s92 = ssub.s32 %s15, %s34
    %s93 = sor.u32 %s91, %s92
    %s94 = ssub.s32 %s17, %s26
    %s95 = sor.u32 %s93, %s94
    %p96 = scmp.eq.s32.totalorder %s95, 0
    %s98 = sadd.s32 %s97, 1
    %s99 = scalar_select %p96, %s97, %s98
    %p102 = pneg %p96
    %p103 = scmp.eq.s32.totalorder %s8, 1
    %p104 = por %p102, %p103
    %p105 = scmp.ne.s32.totalorder %s97, %s100
    %p106 = scmp.eq.s32.totalorder %s8, 0
    %p107 = por %p105, %p106
    %p108 = scmp.ne.s32.totalorder %s97, %s100
    %p109 = scmp.eq.s32.totalorder %s13, 1
    %p110 = por %p108, %p109
    %p111 = scmp.ne.s32.totalorder %s100, %s101
    %p112 = scmp.eq.s32.totalorder %s13, 0
    %p113 = por %p111, %p112
    %p114 = scmp.ne.s32.totalorder %s100, %s101
    %p115 = scmp.eq.s32.totalorder %s14, 1
    %p116 = por %p114, %p115
    %p118 = scmp.ne.s32.totalorder %s101, %s117
    %p119 = scmp.eq.s32.totalorder %s14, 0
    %p120 = por %p118, %p119
    %p121 = scmp.le.s32.totalorder 1, %s8
    %p122 = scmp.lt.s32.totalorder %s8, 3
    %p123 = pnand %p121, %p122
    %p124 = pneg %p123
    // Predicated region
    $region9: #{_unnamed_function_.1} parent=5 // pred_check
      _
    $region10: #{_unnamed_function_.1} parent=5 // pred_check_branch
      %126 = sbr.rel (%p123) target = $region12
    $region11: #{_unnamed_function_.1} parent=5 // pred_region
      %s127 = ssub.s32 %s8, 1
      // Predicated region
      $region13: #{_unnamed_function_.1} parent=11 // pred_check
        %p128 = pneg %p53
      $region14: #{_unnamed_function_.1} parent=11 // pred_check_branch
        %130 = sbr.rel (%p128) target = $region16
      $region15: #{_unnamed_function_.1} parent=11 // pred_region
        %p131 = scmp.lt.s32.totalorder %s18, 0
        %s132 = scalar_select %p131, %s18, 0
        %s133 = smul.addr %s132, 5
        %s134 = smul.addr %s133, 4
        %s135 = scalar_lea.vmem %s0, %s134
      $region16: #{_unnamed_function_.1} parent=11 // pred_fallthru
        _
    $region12: #{_unnamed_function_.1} parent=5 // pred_fallthru
      _
    %p136 = scmp.lt.s32.totalorder %s8, 2
    // Predicated region
    $region17: #{_unnamed_function_.1} parent=5 // pred_check
      %p137 = pneg %p136
    $region18: #{_unnamed_function_.1} parent=5 // pred_check_branch
      %139 = sbr.rel (%p137) target = $region20
    $region19: #{_unnamed_function_.1} parent=5 // pred_region
      // Predicated region
      $region21: #{_unnamed_function_.1} parent=19 // pred_check
        %p140 = pneg %p77
      $region22: #{_unnamed_function_.1} parent=19 // pred_check_branch
        %142 = sbr.rel (%p140) target = $region24
      $region23: #{_unnamed_function_.1} parent=19 // pred_region
        %s143 = smul.u32 32, %s17
        %p144 = scmp.lt.s32.totalorder %s16, 1
        %s145 = scalar_select %p144, %s16, 1
        %p146 = scmp.lt.s32.totalorder %s15, 0
        %s147 = scalar_select %p146, %s15, 0
        %p148 = scmp.lt.s32.totalorder %s143, 31
        %s149 = scalar_select %p148, %s143, 31
        %s150 = smul.addr %s147, 32
        %s151 = sadd.s32 %s149, %s150
        %s152 = smul.addr %s145, 32
        %s153 = sadd.s32 %s151, %s152
        %s154 = smul.addr %s153, 4
        %s155 = scalar_lea.vmem %s1, %s154
        %s156 = smul.u32 32, %s17
      $region24: #{_unnamed_function_.1} parent=19 // pred_fallthru
        _
    $region20: #{_unnamed_function_.1} parent=5 // pred_fallthru
      _
    %p157 = scmp.le.s32.totalorder 1, %s8
    %p158 = scmp.lt.s32.totalorder %s8, 3
    %p159 = pnand %p157, %p158
    %p160 = pneg %p159
    // Predicated region
    $region25: #{_unnamed_function_.1} parent=5 // pred_check
      _
    $region26: #{_unnamed_function_.1} parent=5 // pred_check_branch
      %162 = sbr.rel (%p159) target = $region28
    $region27: #{_unnamed_function_.1} parent=5 // pred_region
      %s163 = ssub.s32 %s8, 1
      %p164 = scmp.lt.s32.totalorder %s18, 0
      %s165 = scalar_select %p164, %s18, 0
      %s166 = smul.addr %s165, 5
      %s167 = smul.addr %s166, 4
      %s168 = scalar_lea.vmem %s0, %s167
      %p169 = pneg %p53
      %p170 = pneg %p50
      %s171 = smul.u32 32, %s20
      %p172 = scmp.lt.s32.totalorder %s19, 1
      %s173 = scalar_select %p172, %s19, 1
      %p174 = scmp.lt.s32.totalorder %s18, 0
      %s175 = scalar_select %p174, %s18, 0
      %p176 = scmp.lt.s32.totalorder %s171, 31
      %s177 = scalar_select %p176, %s171, 31
      %s178 = smul.addr %s175, 32
      %s179 = sadd.s32 %s177, %s178
      %s180 = smul.addr %s173, 32
      %s181 = sadd.s32 %s179, %s180
      %s182 = smul.addr %s181, 4
      %s183 = scalar_lea.vmem %s1, %s182
      %p184 = pneg %p83
      %p185 = pneg %p80
      %p186 = pneg %p113
      %p187 = pneg %p110
      %s188 = smul.u32 32, %s20
      %p189 = scmp.lt.s32.totalorder %s19, 1
      %s190 = scalar_select %p189, %s19, 1
      %p191 = scmp.lt.s32.totalorder %s18, 0
      %s192 = scalar_select %p191, %s18, 0
      %p193 = scmp.lt.s32.totalorder %s188, 31
      %s194 = scalar_select %p193, %s188, 31
      %s195 = smul.addr %s192, 32
      %s196 = sadd.s32 %s194, %s195
      %s197 = smul.addr %s190, 32
      %s198 = sadd.s32 %s196, %s197
      %s199 = smul.addr %s198, 8
      %s200 = scalar_lea.vmem %s2, %s199
      %p201 = scmp.lt.s32.totalorder %s18, 0
      %s202 = scalar_select %p201, %s18, 0
      %s203 = smul.addr %s202, 5
      %s204 = smul.addr %s203, 4
      %s205 = scalar_lea.vmem %s0, %s204
      %s206 = smul.u32 32, %s20
      %p207 = scmp.lt.s32.totalorder %s19, 1
      %s208 = scalar_select %p207, %s19, 1
      %p209 = scmp.lt.s32.totalorder %s18, 0
      %s210 = scalar_select %p209, %s18, 0
      %p211 = scmp.lt.s32.totalorder %s206, 31
      %s212 = scalar_select %p211, %s206, 31
      %s213 = smul.addr %s210, 32
      %s214 = sadd.s32 %s212, %s213
      %s215 = smul.addr %s208, 32
      %s216 = sadd.s32 %s214, %s215
      %s217 = smul.addr %s216, 4
      %s218 = scalar_lea.vmem %s1, %s217
      %s219 = smul.u32 32, %s20
      %s220 = smul.u32 32, %s20
      %p221 = scmp.lt.s32.totalorder %s19, 1
      %s222 = scalar_select %p221, %s19, 1
      %p223 = scmp.lt.s32.totalorder %s18, 0
      %s224 = scalar_select %p223, %s18, 0
      %p225 = scmp.lt.s32.totalorder %s220, 31
      %s226 = scalar_select %p225, %s220, 31
      %s227 = smul.addr %s224, 32
      %s228 = sadd.s32 %s226, %s227
      %s229 = smul.addr %s222, 32
      %s230 = sadd.s32 %s228, %s229
      %s231 = smul.addr %s230, 8
      %s232 = scalar_lea.vmem %s2, %s231
      %s233 = smul.u32 32, %s20
      %v235 = vld [vmem:[%s218] sm:$0xf]
      %v236 = vld [vmem:[%s218 + $0x4] sm:$0xf]
      %v237 = vld [vmem:[%s218 + $0x8] sm:$0xf]
      %v238 = vld [vmem:[%s218 + $0xc] sm:$0xf]
      %v239 = vld [vmem:[%s218 + $0x10] sm:$0xf]
      %v240 = vld [vmem:[%s218 + $0x14] sm:$0xf]
      %v241 = vld [vmem:[%s218 + $0x18] sm:$0xf]
      %v242 = vld [vmem:[%s218 + $0x1c] sm:$0xf]
      %v243 = vld [vmem:[%s218 + $0x20] sm:$0xf]
      %v244 = vld [vmem:[%s218 + $0x24] sm:$0xf]
      %v245 = vld [vmem:[%s218 + $0x28] sm:$0xf]
      %v246 = vld [vmem:[%s218 + $0x2c] sm:$0xf]
      %v247 = vld [vmem:[%s218 + $0x30] sm:$0xf]
      %v248 = vld [vmem:[%s218 + $0x34] sm:$0xf]
      %v249 = vld [vmem:[%s218 + $0x38] sm:$0xf]
      %v250 = vld [vmem:[%s218 + $0x3c] sm:$0xf]
      %v251 = vld [vmem:[%s218 + $0x40] sm:$0xf]
      %v252 = vld [vmem:[%s218 + $0x44] sm:$0xf]
      %v253 = vld [vmem:[%s218 + $0x48] sm:$0xf]
      %v254 = vld [vmem:[%s218 + $0x4c] sm:$0xf]
      %v255 = vld [vmem:[%s218 + $0x50] sm:$0xf]
      %v256 = vld [vmem:[%s218 + $0x54] sm:$0xf]
      %v257 = vld [vmem:[%s218 + $0x58] sm:$0xf]
      %v258 = vld [vmem:[%s218 + $0x5c] sm:$0xf]
      %v259 = vld [vmem:[%s218 + $0x60] sm:$0xf]
      %v260 = vld [vmem:[%s218 + $0x64] sm:$0xf]
      %v261 = vld [vmem:[%s218 + $0x68] sm:$0xf]
      %v262 = vld [vmem:[%s218 + $0x6c] sm:$0xf]
      %v263 = vld [vmem:[%s218 + $0x70] sm:$0xf]
      %v264 = vld [vmem:[%s218 + $0x74] sm:$0xf]
      %v265 = vld [vmem:[%s218 + $0x78] sm:$0xf]
      %v266 = vld [vmem:[%s218 + $0x7c] sm:$0xf]
      %v267 = vld [vmem:[%s205] sm:$0xf]
      %v268 = vld [vmem:[%s205 + $0x4] sm:$0xf]
      %v269 = vld [vmem:[%s205 + $0x8] sm:$0xf]
      %v270 = vld [vmem:[%s205 + $0xc] sm:$0xf]
      %v271 = vld [vmem:[%s205 + $0x10] sm:$0x3]
      %v304 = vunpack.c.l.b16 %v235
      %v305 = vunpack.c.l.b16 %v236
      %v306 = vunpack.c.l.b16 %v237
      %v307 = vunpack.c.l.b16 %v238
      %v308 = vunpack.c.l.b16 %v239
      %v309 = vunpack.c.l.b16 %v240
      %v310 = vunpack.c.l.b16 %v241
      %v311 = vunpack.c.l.b16 %v242
      %v312 = vunpack.c.l.b16 %v243
      %v313 = vunpack.c.l.b16 %v244
      %v314 = vunpack.c.l.b16 %v245
      %v315 = vunpack.c.l.b16 %v246
      %v316 = vunpack.c.l.b16 %v247
      %v317 = vunpack.c.l.b16 %v248
      %v318 = vunpack.c.l.b16 %v249
      %v319 = vunpack.c.l.b16 %v250
      %v320 = vunpack.c.l.b16 %v251
      %v321 = vunpack.c.l.b16 %v252
      %v322 = vunpack.c.l.b16 %v253
      %v323 = vunpack.c.l.b16 %v254
      %v324 = vunpack.c.l.b16 %v255
      %v325 = vunpack.c.l.b16 %v256
      %v326 = vunpack.c.l.b16 %v257
      %v327 = vunpack.c.l.b16 %v258
      %v328 = vunpack.c.l.b16 %v259
      %v329 = vunpack.c.l.b16 %v260
      %v330 = vunpack.c.l.b16 %v261
      %v331 = vunpack.c.l.b16 %v262
      %v332 = vunpack.c.l.b16 %v263
      %v333 = vunpack.c.l.b16 %v264
      %v334 = vunpack.c.l.b16 %v265
      %v335 = vunpack.c.l.b16 %v266
      %v336 = vpack.c.b16 %v305, %v304
      %v337 = vpack.c.b16 %v307, %v306
      %v338 = vpack.c.b16 %v309, %v308
      %v339 = vpack.c.b16 %v311, %v310
      %v340 = vpack.c.b16 %v313, %v312
      %v341 = vpack.c.b16 %v315, %v314
      %v342 = vpack.c.b16 %v317, %v316
      %v343 = vpack.c.b16 %v319, %v318
      %v344 = vpack.c.b16 %v321, %v320
      %v345 = vpack.c.b16 %v323, %v322
      %v346 = vpack.c.b16 %v325, %v324
      %v347 = vpack.c.b16 %v327, %v326
      %v348 = vpack.c.b16 %v329, %v328
      %v349 = vpack.c.b16 %v331, %v330
      %v350 = vpack.c.b16 %v333, %v332
      %v351 = vpack.c.b16 %v335, %v334
      %v357 = vunpack.c.l.b16 %v267
      %v358 = vunpack.c.l.b16 %v268
      %v359 = vunpack.c.l.b16 %v269
      %v360 = vunpack.c.l.b16 %v270
      %v361 = vunpack.c.l.b16 %v271
      %v362 = vpack.c.b16 %v358, %v357
      %v363 = vpack.c.b16 %v360, %v359
      %v364 = vpack.c.b16 %v361, %v361
      %vm367 = vcmask 293888
      %v369 = vsel %vm367, %v336, 0
      %v372 = vsel %vm367, %v337, 0
      %v375 = vsel %vm367, %v338, 0
      %v378 = vsel %vm367, %v339, 0
      %v381 = vsel %vm367, %v340, 0
      %v384 = vsel %vm367, %v341, 0
      %v387 = vsel %vm367, %v342, 0
      %v390 = vsel %vm367, %v343, 0
      %v393 = vsel %vm367, %v344, 0
      %v396 = vsel %vm367, %v345, 0
      %v399 = vsel %vm367, %v346, 0
      %v402 = vsel %vm367, %v347, 0
      %v405 = vsel %vm367, %v348, 0
      %v408 = vsel %vm367, %v349, 0
      %v411 = vsel %vm367, %v350, 0
      %v414 = vsel %vm367, %v351, 0
      %vm416 = vcmask 1041408
      %v418 = vsel %vm416, %v364, 0
      %420 = vmatprep.subr.bf16.mxu0 0
      %421 = vmatpush1.bf16.msra.mxu0 0
      %422 = vmatprep.subr.bf16.mxu0 0
      %423 = vmatpush1.bf16.msra.mxu0 0
      %424 = vmatprep.subr.bf16.mxu0 0
      %425 = vmatpush1.bf16.msra.mxu0 0
      %426 = vmatprep.subr.bf16.mxu0 0
      %427 = vmatpush1.bf16.msra.mxu0 0
      %428 = vmatprep.subr.bf16.mxu0 0
      %429 = vmatpush1.bf16.msra.mxu0 0
      %430 = vmatprep.subr.bf16.mxu0 0
      %431 = vmatpush1.bf16.msra.mxu0 %v418
      %432 = vmatprep.subr.bf16.mxu0 0
      %433 = vmatpush1.bf16.msra.mxu0 %v363
      %434 = vmatprep.subr.bf16.mxu0 0
      %435 = vmatpush1.bf16.msra.mxu0 %v362
      %436 = vmatprep.subr.bf16.mxu0 0
      %437 = vmatpush2.bf16.msra.mxu0 0
      %438 = vmatprep.subr.bf16.mxu0 0
      %439 = vmatpush2.bf16.msra.mxu0 0
      %440 = vmatprep.subr.bf16.mxu0 0
      %441 = vmatpush2.bf16.msra.mxu0 0
      %442 = vmatprep.subr.bf16.mxu0 0
      %443 = vmatpush2.bf16.msra.mxu0 0
      %444 = vmatprep.subr.bf16.mxu0 0
      %445 = vmatpush2.bf16.msra.mxu0 0
      %446 = vmatprep.subr.bf16.mxu0 0
      %447 = vmatpush2.bf16.msra.mxu0 0
      %448 = vmatprep.subr.bf16.mxu0 0
      %449 = vmatpush2.bf16.msra.mxu0 0
      %450 = vmatprep.subr.bf16.mxu0 0
      %451 = vmatpush2.bf16.msra.mxu0 0
      %452 = vmatprep.mubr.bf16.mxu0 0
      %453 = vmatmul.mubr.bf16.gmra.mxu0 %v369
      %v454 = vpop.f32.mrf.mxu0
      %v455 = vadd.f32 0.0, %v454
      %v456 = vpop.f32.mrf.mxu0
      %v457 = vpop.f32.mrf.mxu0
      %v458 = vadd.f32 0.0, %v457
      %v459 = vpop.f32.mrf.mxu0
      %460 = vmatprep.mubr.bf16.mxu0 0
      %461 = vmatmul.mubr.bf16.gmra.mxu0 %v372
      %v462 = vpop.f32.mrf.mxu0
      %v463 = vadd.f32 0.0, %v462
      %v464 = vpop.f32.mrf.mxu0
      %v465 = vpop.f32.mrf.mxu0
      %v466 = vadd.f32 0.0, %v465
      %v467 = vpop.f32.mrf.mxu0
      %468 = vmatprep.mubr.bf16.mxu0 0
      %469 = vmatmul.mubr.bf16.gmra.mxu0 %v375
      %v470 = vpop.f32.mrf.mxu0
      %v471 = vadd.f32 0.0, %v470
      %v472 = vpop.f32.mrf.mxu0
      %v473 = vpop.f32.mrf.mxu0
      %v474 = vadd.f32 0.0, %v473
      %v475 = vpop.f32.mrf.mxu0
      %476 = vmatprep.mubr.bf16.mxu0 0
      %477 = vmatmul.mubr.bf16.gmra.mxu0 %v378
      %v478 = vpop.f32.mrf.mxu0
      %v479 = vadd.f32 0.0, %v478
      %v480 = vpop.f32.mrf.mxu0
      %v481 = vpop.f32.mrf.mxu0
      %v482 = vadd.f32 0.0, %v481
      %v483 = vpop.f32.mrf.mxu0
      %484 = vmatprep.mubr.bf16.mxu0 0
      %485 = vmatmul.mubr.bf16.gmra.mxu0 %v381
      %v486 = vpop.f32.mrf.mxu0
      %v487 = vadd.f32 0.0, %v486
      %v488 = vpop.f32.mrf.mxu0
      %v489 = vpop.f32.mrf.mxu0
      %v490 = vadd.f32 0.0, %v489
      %v491 = vpop.f32.mrf.mxu0
      %492 = vmatprep.mubr.bf16.mxu0 0
      %493 = vmatmul.mubr.bf16.gmra.mxu0 %v384
      %v494 = vpop.f32.mrf.mxu0
      %v495 = vadd.f32 0.0, %v494
      %v496 = vpop.f32.mrf.mxu0
      %v497 = vpop.f32.mrf.mxu0
      %v498 = vadd.f32 0.0, %v497
      %v499 = vpop.f32.mrf.mxu0
      %500 = vmatprep.mubr.bf16.mxu0 0
      %501 = vmatmul.mubr.bf16.gmra.mxu0 %v387
      %v502 = vpop.f32.mrf.mxu0
      %v503 = vadd.f32 0.0, %v502
      %v504 = vpop.f32.mrf.mxu0
      %v505 = vpop.f32.mrf.mxu0
      %v506 = vadd.f32 0.0, %v505
      %v507 = vpop.f32.mrf.mxu0
      %508 = vmatprep.mubr.bf16.mxu0 0
      %509 = vmatmul.mubr.bf16.gmra.mxu0 %v390
      %v510 = vpop.f32.mrf.mxu0
      %v511 = vadd.f32 0.0, %v510
      %v512 = vpop.f32.mrf.mxu0
      %v513 = vpop.f32.mrf.mxu0
      %v514 = vadd.f32 0.0, %v513
      %v515 = vpop.f32.mrf.mxu0
      %516 = vmatprep.mubr.bf16.mxu0 0
      %517 = vmatmul.mubr.bf16.gmra.mxu0 %v393
      %v518 = vpop.f32.mrf.mxu0
      %v519 = vadd.f32 0.0, %v518
      %v520 = vpop.f32.mrf.mxu0
      %v521 = vpop.f32.mrf.mxu0
      %v522 = vadd.f32 0.0, %v521
      %v523 = vpop.f32.mrf.mxu0
      %524 = vmatprep.mubr.bf16.mxu0 0
      %525 = vmatmul.mubr.bf16.gmra.mxu0 %v396
      %v526 = vpop.f32.mrf.mxu0
      %v527 = vadd.f32 0.0, %v526
      %v528 = vpop.f32.mrf.mxu0
      %v529 = vpop.f32.mrf.mxu0
      %v530 = vadd.f32 0.0, %v529
      %v531 = vpop.f32.mrf.mxu0
      %532 = vmatprep.mubr.bf16.mxu0 0
      %533 = vmatmul.mubr.bf16.gmra.mxu0 %v399
      %v534 = vpop.f32.mrf.mxu0
      %v535 = vadd.f32 0.0, %v534
      %v536 = vpop.f32.mrf.mxu0
      %v537 = vpop.f32.mrf.mxu0
      %v538 = vadd.f32 0.0, %v537
      %v539 = vpop.f32.mrf.mxu0
      %540 = vmatprep.mubr.bf16.mxu0 0
      %541 = vmatmul.mubr.bf16.gmra.mxu0 %v402
      %v542 = vpop.f32.mrf.mxu0
      %v543 = vadd.f32 0.0, %v542
      %v544 = vpop.f32.mrf.mxu0
      %v545 = vpop.f32.mrf.mxu0
      %v546 = vadd.f32 0.0, %v545
      %v547 = vpop.f32.mrf.mxu0
      %548 = vmatprep.mubr.bf16.mxu0 0
      %549 = vmatmul.mubr.bf16.gmra.mxu0 %v405
      %v550 = vpop.f32.mrf.mxu0
      %v551 = vadd.f32 0.0, %v550
      %v552 = vpop.f32.mrf.mxu0
      %v553 = vpop.f32.mrf.mxu0
      %v554 = vadd.f32 0.0, %v553
      %v555 = vpop.f32.mrf.mxu0
      %556 = vmatprep.mubr.bf16.mxu0 0
      %557 = vmatmul.mubr.bf16.gmra.mxu0 %v408
      %v558 = vpop.f32.mrf.mxu0
      %v559 = vadd.f32 0.0, %v558
      %v560 = vpop.f32.mrf.mxu0
      %v561 = vpop.f32.mrf.mxu0
      %v562 = vadd.f32 0.0, %v561
      %v563 = vpop.f32.mrf.mxu0
      %564 = vmatprep.mubr.bf16.mxu0 0
      %565 = vmatmul.mubr.bf16.gmra.mxu0 %v411
      %v566 = vpop.f32.mrf.mxu0
      %v567 = vadd.f32 0.0, %v566
      %v568 = vpop.f32.mrf.mxu0
      %v569 = vpop.f32.mrf.mxu0
      %v570 = vadd.f32 0.0, %v569
      %v571 = vpop.f32.mrf.mxu0
      %572 = vmatprep.mubr.bf16.mxu0 0
      %573 = vmatmul.mubr.bf16.gmra.mxu0 %v414
      %v574 = vpop.f32.mrf.mxu0
      %v575 = vadd.f32 0.0, %v574
      %v576 = vpop.f32.mrf.mxu0
      %v577 = vpop.f32.mrf.mxu0
      %v578 = vadd.f32 0.0, %v577
      %v579 = vpop.f32.mrf.mxu0
      %580 = vdwg.mxu0
      %vm581 = vcmask 64512
      %582 = vst.msk [vmem:[%s232] sm:$0xff] %vm581, %v455
      %583 = vst.msk [vmem:[%s232 + $0x8] sm:$0xff] %vm581, %v458
      %584 = vst.msk [vmem:[%s232 + $0x10] sm:$0xff] %vm581, %v463
      %585 = vst.msk [vmem:[%s232 + $0x18] sm:$0xff] %vm581, %v466
      %586 = vst.msk [vmem:[%s232 + $0x20] sm:$0xff] %vm581, %v471
      %587 = vst.msk [vmem:[%s232 + $0x28] sm:$0xff] %vm581, %v474
      %588 = vst.msk [vmem:[%s232 + $0x30] sm:$0xff] %vm581, %v479
      %589 = vst.msk [vmem:[%s232 + $0x38] sm:$0xff] %vm581, %v482
      %590 = vst.msk [vmem:[%s232 + $0x40] sm:$0xff] %vm581, %v487
      %591 = vst.msk [vmem:[%s232 + $0x48] sm:$0xff] %vm581, %v490
      %592 = vst.msk [vmem:[%s232 + $0x50] sm:$0xff] %vm581, %v495
      %593 = vst.msk [vmem:[%s232 + $0x58] sm:$0xff] %vm581, %v498
      %594 = vst.msk [vmem:[%s232 + $0x60] sm:$0xff] %vm581, %v503
      %595 = vst.msk [vmem:[%s232 + $0x68] sm:$0xff] %vm581, %v506
      %596 = vst.msk [vmem:[%s232 + $0x70] sm:$0xff] %vm581, %v511
      %597 = vst.msk [vmem:[%s232 + $0x78] sm:$0xff] %vm581, %v514
      %598 = vst.msk [vmem:[%s232 + $0x80] sm:$0xff] %vm581, %v519
      %599 = vst.msk [vmem:[%s232 + $0x88] sm:$0xff] %vm581, %v522
      %600 = vst.msk [vmem:[%s232 + $0x90] sm:$0xff] %vm581, %v527
      %601 = vst.msk [vmem:[%s232 + $0x98] sm:$0xff] %vm581, %v530
      %602 = vst.msk [vmem:[%s232 + $0xa0] sm:$0xff] %vm581, %v535
      %603 = vst.msk [vmem:[%s232 + $0xa8] sm:$0xff] %vm581, %v538
      %604 = vst.msk [vmem:[%s232 + $0xb0] sm:$0xff] %vm581, %v543
      %605 = vst.msk [vmem:[%s232 + $0xb8] sm:$0xff] %vm581, %v546
      %606 = vst.msk [vmem:[%s232 + $0xc0] sm:$0xff] %vm581, %v551
      %607 = vst.msk [vmem:[%s232 + $0xc8] sm:$0xff] %vm581, %v554
      %608 = vst.msk [vmem:[%s232 + $0xd0] sm:$0xff] %vm581, %v559
      %609 = vst.msk [vmem:[%s232 + $0xd8] sm:$0xff] %vm581, %v562
      %610 = vst.msk [vmem:[%s232 + $0xe0] sm:$0xff] %vm581, %v567
      %611 = vst.msk [vmem:[%s232 + $0xe8] sm:$0xff] %vm581, %v570
      %612 = vst.msk [vmem:[%s232 + $0xf0] sm:$0xff] %vm581, %v575
      %613 = vst.msk [vmem:[%s232 + $0xf8] sm:$0xff] %vm581, %v578
      %s614 = smul.u32 32, %s20
      %p615 = scmp.lt.s32.totalorder %s19, 1
      %s616 = scalar_select %p615, %s19, 1
      %p617 = scmp.lt.s32.totalorder %s18, 0
      %s618 = scalar_select %p617, %s18, 0
      %p619 = scmp.lt.s32.totalorder %s614, 31
      %s620 = scalar_select %p619, %s614, 31
      %s621 = smul.addr %s618, 32
      %s622 = sadd.s32 %s620, %s621
      %s623 = smul.addr %s616, 32
      %s624 = sadd.s32 %s622, %s623
      %s625 = smul.addr %s624, 8
      %s626 = scalar_lea.vmem %s2, %s625
      // Predicated region
      $region29: #{_unnamed_function_.1} parent=27 // pred_check
        %p627 = pneg %p110
      $region30: #{_unnamed_function_.1} parent=27 // pred_check_branch
        %629 = sbr.rel (%p627) target = $region32
      $region31: #{_unnamed_function_.1} parent=27 // pred_region
        %s630 = smul.u32 32, %s20
      $region32: #{_unnamed_function_.1} parent=27 // pred_fallthru
        _
    $region28: #{_unnamed_function_.1} parent=5 // pred_fallthru
      _
    %p631 = scmp.le.s32.totalorder 2, %s8
    // Predicated region
    $region33: #{_unnamed_function_.1} parent=5 // pred_check
      %p632 = pneg %p631
    $region34: #{_unnamed_function_.1} parent=5 // pred_check_branch
      %634 = sbr.rel (%p632) target = $region36
    $region35: #{_unnamed_function_.1} parent=5 // pred_region
      %s635 = ssub.s32 %s8, 2
      // Predicated region
      $region37: #{_unnamed_function_.1} parent=35 // pred_check
        %p636 = pneg %p116
      $region38: #{_unnamed_function_.1} parent=35 // pred_check_branch
        %638 = sbr.rel (%p636) target = $region40
      $region39: #{_unnamed_function_.1} parent=35 // pred_region
        %s639 = smul.u32 32, %s23
        %p640 = scmp.lt.s32.totalorder %s22, 1
        %s641 = scalar_select %p640, %s22, 1
        %p642 = scmp.lt.s32.totalorder %s21, 0
        %s643 = scalar_select %p642, %s21, 0
        %p644 = scmp.lt.s32.totalorder %s639, 31
        %s645 = scalar_select %p644, %s639, 31
        %s646 = smul.addr %s643, 32
        %s647 = sadd.s32 %s645, %s646
        %s648 = smul.addr %s641, 32
        %s649 = sadd.s32 %s647, %s648
        %s650 = smul.addr %s649, 8
        %s651 = scalar_lea.vmem %s2, %s650
      $region40: #{_unnamed_function_.1} parent=35 // pred_fallthru
        _
    $region36: #{_unnamed_function_.1} parent=5 // pred_fallthru
      _
  $region6: #{_unnamed_function_.1} parent=0 // loop_footer
    %s12 = sadd.s32 1, %s8
  $region7: #{_unnamed_function_.1} parent=0 // loop_footer_branch
    %7 = sbr.rel target = $region3
  $region8: #{_unnamed_function_.1} parent=0 // loop_exit
    _

</llo_original>
